<compile_context>
chip_gen: v6e
topology: v6e:2x2x1
jax: 0.10.0
libtpu: 0.0.40
codegen_flags: <defaults>
</compile_context>

<pallas_src>
import math

import jax
import jax.numpy as jnp
from jax import lax
from jax.experimental import pallas as pl
from jax.experimental.pallas import tpu as pltpu


def _round_up(x, m):
    return ((x + m - 1) // m) * m


def _choose_batch_tile(B, max_tile=8):
    """Largest divisor of B (<= max_tile) that still leaves >= 2 grid steps."""
    if B <= 1:
        return 1
    best = 1
    for bt in range(1, min(B, max_tile) + 1):
        if B % bt == 0 and B // bt >= 2:
            best = bt
    return best


def _ocr_ptr_kernel(q_in_ref, k_in_ref, mask_ref,
                    wq_ref, bq_ref, wk_ref, bk_ref,
                    out_ref):
    # q_in_ref: (Bt, Tq, H) bf16, k_in_ref: (Bt, Tk, H) bf16,
    # mask_ref: (Bt, 1, Tk) f32, weights (H, QK) bf16, biases (1, QK) f32.
    Bt, Tq, H = q_in_ref.shape
    _, Tk, _ = k_in_ref.shape
    QK = wq_ref.shape[1]

    # Flatten the batch tile into the matmul rows so the MXU sees Bt*T rows
    # instead of Tq (or 1) rows per pass.
    q_flat = q_in_ref[...].reshape(Bt * Tq, H)        # (Bt*Tq, H) bf16
    k_flat = k_in_ref[...].reshape(Bt * Tk, H)        # (Bt*Tk, H) bf16

    # Linear projections (MXU, f32 accumulation). 1/sqrt(QK) is already folded
    # into wq/bq, so no per-element rescale of the scores is needed.
    q_proj = (jnp.dot(q_flat, wq_ref[...],
                      preferred_element_type=jnp.float32)
              + bq_ref[...])                          # (Bt*Tq, QK) f32
    k_proj = (jnp.dot(k_flat, wk_ref[...],
                      preferred_element_type=jnp.float32)
              + bk_ref[...])                          # (Bt*Tk, QK) f32

    # scores[b] = Q[b] K[b]^T, done as a batched dot_general with a transposed
    # contraction (no explicit .T -> no XLU transpose).
    q3 = q_proj.reshape(Bt, Tq, QK).astype(jnp.bfloat16)
    k3 = k_proj.reshape(Bt, Tk, QK).astype(jnp.bfloat16)
    scores = lax.dot_general(
        q3, k3,
        dimension_numbers=(((2,), (2,)), ((0,), (0,))),
        preferred_element_type=jnp.float32)           # (Bt, Tq, Tk) f32

    # Extended attention mask: (1 - mask) * -10000, broadcast over query dim.
    ext_mask = (1.0 - mask_ref[...]) * (-10000.0)     # (Bt, 1, Tk) f32
    out_ref[...] = scores + ext_mask                  # (Bt, Tq, Tk) f32


def prepare_params(params, query_key_size):
    """One-time weight preprocessing: fold 1/sqrt(QK) into Wq/bq, cast weights
    to bf16 (biases stay f32)."""
    wq_t, bq, wk_t, bk = params
    inv = 1.0 / math.sqrt(query_key_size)
    wq_t = (wq_t * inv).astype(jnp.bfloat16)
    bq = (bq * inv).astype(jnp.float32).reshape(1, -1)
    wk_t = wk_t.astype(jnp.bfloat16)
    bk = bk.astype(jnp.float32).reshape(1, -1)
    return wq_t, bq, wk_t, bk


def ocr_ptr_net(query_inputs, key_inputs, attention_mask, prepared_params,
                *, batch_tile=None):
    """JAX/Pallas equivalent of OcrPtrNet.forward.

    `prepared_params` must come from prepare_params() (scale folded, bf16
    weights, f32 biases in (1, QK) layout)."""
    wq_t, bq, wk_t, bk = prepared_params

    squeeze_result = False
    if query_inputs.ndim == 2:
        query_inputs = query_inputs[:, None, :]       # (B, 1, H)
        squeeze_result = True

    B, Tq, H = query_inputs.shape
    _, Tk, _ = key_inputs.shape
    QK = wq_t.shape[1]
    assert attention_mask.ndim == 2 and attention_mask.shape == (B, Tk)

    # Lane-dense output: pad Tk (key/score lane dim) to a multiple of 128.
    # Padded key rows are zero and padded mask entries are zero, so padded
    # score columns are just (-10000 + junk) and get sliced off below.
    Tk_pad = _round_up(Tk, 128)
    if Tk_pad != Tk:
        key_inputs = jnp.pad(key_inputs,
                             ((0, 0), (0, Tk_pad - Tk), (0, 0)))
        attention_mask = jnp.pad(attention_mask,
                                 ((0, 0), (0, Tk_pad - Tk)))

    # 3-D mask so the BlockSpec's last two dims are full dims (layout-clean).
    mask3 = attention_mask.astype(jnp.float32)[:, None, :]   # (B, 1, Tk_pad)

    # bf16 activations: halves HBM->VMEM DMA bytes and MXU passes.
    q_bf = query_inputs.astype(jnp.bfloat16)
    k_bf = key_inputs.astype(jnp.bfloat16)

    if batch_tile is None:
        batch_tile = _choose_batch_tile(B)
    Bt = batch_tile
    assert B % Bt == 0, "batch_tile must divide the batch size"
    grid = (B // Bt,)

    # NOTE: for production sizes (e.g. H=QK=768) the constant weight blocks are
    # still double-buffered by default; bf16 weights keep that well under the
    # 32 MiB scoped VMEM default on v7x. Raise vmem_limit_bytes if needed.
    scores = pl.pallas_call(
        _ocr_ptr_kernel,
        out_shape=jax.ShapeDtypeStruct((B, Tq, Tk_pad), jnp.float32),
        grid_spec=pltpu.PrefetchScalarGridSpec(
            num_scalar_prefetch=0,
            grid=grid,
            in_specs=[
                pl.BlockSpec((Bt, Tq, H), lambda b: (b, 0, 0)),      # queries
                pl.BlockSpec((Bt, Tk_pad, H), lambda b: (b, 0, 0)),  # keys
                pl.BlockSpec((Bt, 1, Tk_pad), lambda b: (b, 0, 0)),  # mask
                pl.BlockSpec((H, QK), lambda b: (0, 0)),             # Wq^T
                pl.BlockSpec((1, QK), lambda b: (0, 0)),             # bq
                pl.BlockSpec((H, QK), lambda b: (0, 0)),             # Wk^T
                pl.BlockSpec((1, QK), lambda b: (0, 0)),             # bk
            ],
            out_specs=pl.BlockSpec((Bt, Tq, Tk_pad), lambda b: (b, 0, 0)),
        ),
        compiler_params=pltpu.CompilerParams(
            dimension_semantics=("parallel",)),
    )(q_bf, k_bf, mask3, wq_t, bq, wk_t, bk)

    scores = scores[:, :, :Tk]
    if squeeze_result:
        scores = scores[:, 0, :]                      # (B, Tk)
    return scores


def init_params(key, hidden_size, query_key_size=None):
    """Deterministic synthetic init matching nn.Linear(hidden, qk) shapes (f32)."""
    if query_key_size is None:
        query_key_size = hidden_size
    k1, k2, k3, k4 = jax.random.split(key, 4)
    bound = 1.0 / math.sqrt(hidden_size)
    # nn.Linear weight is (out, in); we store the transpose (in, out) for x @ W.
    wq_t = jax.random.uniform(k1, (hidden_size, query_key_size),
                              jnp.float32, -bound, bound)
    bq = jax.random.uniform(k2, (1, query_key_size), jnp.float32, -bound, bound)
    wk_t = jax.random.uniform(k3, (hidden_size, query_key_size),
                              jnp.float32, -bound, bound)
    bk = jax.random.uniform(k4, (1, query_key_size), jnp.float32, -bound, bound)
    return wq_t, bq, wk_t, bk


def _reference(query_inputs, key_inputs, attention_mask, params_f32):
    """Pure-JAX f32 reference mirroring the PyTorch forward exactly."""
    wq_t, bq, wk_t, bk = params_f32
    ext = ((1.0 - attention_mask) * -10000.0)[:, None, :]
    squeeze_result = False
    q = query_inputs
    if q.ndim == 2:
        q = q[:, None, :]
        squeeze_result = True
    q_layer = q @ wq_t + bq
    k_layer = key_inputs @ wk_t + bk
    scores = jnp.einsum('bqd,bkd->bqk', q_layer, k_layer,
                        precision=lax.Precision.HIGHEST)
    scores = scores / math.sqrt(wq_t.shape[1]) + ext
    if squeeze_result:
        scores = scores[:, 0, :]
    return scores


if __name__ == "__main__":
    B, Tq, Tk, H = 2, 8, 16, 32   # hidden_size = query_key_size = 32

    root = jax.random.PRNGKey(0)
    kp, kq, kk, km = jax.random.split(root, 4)

    params_f32 = init_params(kp, H)
    params = prepare_params(params_f32, query_key_size=H)

    query_inputs = jax.random.normal(kq, (B, Tq, H), jnp.float32)
    key_inputs = jax.random.normal(kk, (B, Tk, H), jnp.float32)
    attention_mask = (jax.random.uniform(km, (B, Tk)) > 0.3).astype(jnp.float32)

    # bf16 operands -> compare against the f32 reference with a bf16 tolerance.
    ATOL, RTOL = 1e-1, 2e-2

    # 3-D query case
    scores = ocr_ptr_net(query_inputs, key_inputs, attention_mask, params)
    scores = jax.block_until_ready(scores)
    ref = _reference(query_inputs, key_inputs, attention_mask, params_f32)
    assert scores.shape == (B, Tq, Tk)
    assert jnp.allclose(scores, ref, atol=ATOL, rtol=RTOL)

    # 2-D query case (squeeze / decode path)
    scores2 = ocr_ptr_net(query_inputs[:, 0, :], key_inputs, attention_mask, params)
    scores2 = jax.block_until_ready(scores2)
    ref2 = _reference(query_inputs[:, 0, :], key_inputs, attention_mask, params_f32)
    assert scores2.shape == (B, Tk)
    assert jnp.allclose(scores2, ref2, atol=ATOL, rtol=RTOL)

    print("KERNEL_OK")
</pallas_src>

<mosaic_0001>
module attributes {stable_mosaic.version = 11 : i64} {
  func.func @_ocr_ptr_kernel(%arg0: i32, %arg1: memref<1x8x32xbf16, #tpu.memory_space<vmem>>, %arg2: memref<1x128x32xbf16, #tpu.memory_space<vmem>>, %arg3: memref<1x1x128xf32, #tpu.memory_space<vmem>>, %arg4: memref<32x32xbf16, #tpu.memory_space<vmem>>, %arg5: memref<1x32xf32, #tpu.memory_space<vmem>>, %arg6: memref<32x32xbf16, #tpu.memory_space<vmem>>, %arg7: memref<1x32xf32, #tpu.memory_space<vmem>>, %arg8: memref<1x8x128xf32, #tpu.memory_space<vmem>>) attributes {dimension_semantics = [#tpu.dimension_semantics<parallel>], iteration_bounds = array<i64: 2>, scalar_prefetch = 0 : i64, scratch_operands = 0 : i64, tpu.core_type = #tpu.core_type<tc>, window_params = [{transform_indices = @transform_0, window_bounds = array<i64: 1, 8, 32>}, {transform_indices = @transform_1, window_bounds = array<i64: 1, 128, 32>}, {transform_indices = @transform_2, window_bounds = array<i64: 1, 1, 128>}, {pipeline_mode = #tpu.pipeline_mode<synchronous>, transform_indices = @transform_3, window_bounds = array<i64: 32, 32>}, {pipeline_mode = #tpu.pipeline_mode<synchronous>, transform_indices = @transform_4, window_bounds = array<i64: 1, 32>}, {pipeline_mode = #tpu.pipeline_mode<synchronous>, transform_indices = @transform_5, window_bounds = array<i64: 32, 32>}, {pipeline_mode = #tpu.pipeline_mode<synchronous>, transform_indices = @transform_6, window_bounds = array<i64: 1, 32>}, {transform_indices = @transform_7, window_bounds = array<i64: 1, 8, 128>}]} {
    %c0 = arith.constant 0 : index
    %c0_0 = arith.constant 0 : index
    %c0_1 = arith.constant 0 : index
    %0 = vector.load %arg1[%c0, %c0_0, %c0_1] : memref<1x8x32xbf16, #tpu.memory_space<vmem>>, vector<1x8x32xbf16>
    %1 = vector.shape_cast %0 : vector<1x8x32xbf16> to vector<8x32xbf16>
    %c0_2 = arith.constant 0 : index
    %c0_3 = arith.constant 0 : index
    %c0_4 = arith.constant 0 : index
    %2 = vector.load %arg2[%c0_2, %c0_3, %c0_4] : memref<1x128x32xbf16, #tpu.memory_space<vmem>>, vector<1x128x32xbf16>
    %3 = vector.shape_cast %2 : vector<1x128x32xbf16> to vector<128x32xbf16>
    %c0_5 = arith.constant 0 : index
    %c0_6 = arith.constant 0 : index
    %4 = vector.load %arg4[%c0_5, %c0_6] : memref<32x32xbf16, #tpu.memory_space<vmem>>, vector<32x32xbf16>
    %cst = arith.constant dense<0.000000e+00> : vector<8x32xf32>
    %5 = tpu.matmul %1, %4, %cst {dimension_numbers = #tpu.dot_dimension_numbers<[1], [0], [0], [1], [0, 0, 1, 1], [], []>} : vector<8x32xbf16>, vector<32x32xbf16>, vector<8x32xf32> -> vector<8x32xf32>
    %c0_7 = arith.constant 0 : index
    %c0_8 = arith.constant 0 : index
    %6 = vector.load %arg5[%c0_7, %c0_8] : memref<1x32xf32, #tpu.memory_space<vmem>>, vector<1x32xf32>
    %7 = vector.broadcast %6 : vector<1x32xf32> to vector<8x32xf32>
    %8 = arith.addf %5, %7 : vector<8x32xf32>
    %c0_9 = arith.constant 0 : index
    %c0_10 = arith.constant 0 : index
    %9 = vector.load %arg6[%c0_9, %c0_10] : memref<32x32xbf16, #tpu.memory_space<vmem>>, vector<32x32xbf16>
    %cst_11 = arith.constant dense<0.000000e+00> : vector<128x32xf32>
    %10 = tpu.matmul %3, %9, %cst_11 {dimension_numbers = #tpu.dot_dimension_numbers<[1], [0], [0], [1], [0, 0, 1, 1], [], []>} : vector<128x32xbf16>, vector<32x32xbf16>, vector<128x32xf32> -> vector<128x32xf32>
    %c0_12 = arith.constant 0 : index
    %c0_13 = arith.constant 0 : index
    %11 = vector.load %arg7[%c0_12, %c0_13] : memref<1x32xf32, #tpu.memory_space<vmem>>, vector<1x32xf32>
    %12 = vector.broadcast %11 : vector<1x32xf32> to vector<128x32xf32>
    %13 = arith.addf %10, %12 : vector<128x32xf32>
    %14 = vector.shape_cast %8 : vector<8x32xf32> to vector<1x8x32xf32>
    %15 = arith.truncf %14 : vector<1x8x32xf32> to vector<1x8x32xbf16>
    %16 = vector.shape_cast %13 : vector<128x32xf32> to vector<1x128x32xf32>
    %17 = arith.truncf %16 : vector<1x128x32xf32> to vector<1x128x32xbf16>
    %cst_14 = arith.constant dense<0.000000e+00> : vector<1x8x128xf32>
    %18 = tpu.matmul %15, %17, %cst_14 {dimension_numbers = #tpu.dot_dimension_numbers<[2], [2], [1], [1], [0, 0, 0, 1, 1, 1], [0], [0]>} : vector<1x8x32xbf16>, vector<1x128x32xbf16>, vector<1x8x128xf32> -> vector<1x8x128xf32>
    %c0_15 = arith.constant 0 : index
    %c0_16 = arith.constant 0 : index
    %c0_17 = arith.constant 0 : index
    %19 = vector.load %arg3[%c0_15, %c0_16, %c0_17] : memref<1x1x128xf32, #tpu.memory_space<vmem>>, vector<1x1x128xf32>
    %cst_18 = arith.constant 1.000000e+00 : f32
    %20 = vector.broadcast %cst_18 : f32 to vector<1x1x128xf32>
    %21 = arith.subf %20, %19 : vector<1x1x128xf32>
    %cst_19 = arith.constant -1.000000e+04 : f32
    %22 = vector.broadcast %cst_19 : f32 to vector<1x1x128xf32>
    %23 = arith.mulf %21, %22 : vector<1x1x128xf32>
    %24 = vector.broadcast %23 : vector<1x1x128xf32> to vector<1x8x128xf32>
    %25 = arith.addf %18, %24 : vector<1x8x128xf32>
    %c0_20 = arith.constant 0 : index
    %c0_21 = arith.constant 0 : index
    %c0_22 = arith.constant 0 : index
    %26 = vector.load %arg8[%c0_20, %c0_21, %c0_22] : memref<1x8x128xf32, #tpu.memory_space<vmem>>, vector<1x8x128xf32>
    tpu.vector_store %arg8[%c0_20, %c0_21, %c0_22], %25 {strides = array<i32>} : memref<1x8x128xf32, #tpu.memory_space<vmem>>, vector<1x8x128xf32>,
    return
  }
  func.func @transform_0(%arg0: i32) -> (i32, i32, i32) {
    %c0_i32 = arith.constant 0 : i32
    %c0_i32_0 = arith.constant 0 : i32
    %c0_i32_1 = arith.constant 0 : i32
    return %arg0, %c0_i32, %c0_i32_0 : i32, i32, i32
  }
  func.func @transform_1(%arg0: i32) -> (i32, i32, i32) {
    %c0_i32 = arith.constant 0 : i32
    %c0_i32_0 = arith.constant 0 : i32
    %c0_i32_1 = arith.constant 0 : i32
    return %arg0, %c0_i32, %c0_i32_0 : i32, i32, i32
  }
  func.func @transform_2(%arg0: i32) -> (i32, i32, i32) {
    %c0_i32 = arith.constant 0 : i32
    %c0_i32_0 = arith.constant 0 : i32
    %c0_i32_1 = arith.constant 0 : i32
    return %arg0, %c0_i32, %c0_i32_0 : i32, i32, i32
  }
  func.func @transform_3(%arg0: i32) -> (i32, i32) {
    %c0_i32 = arith.constant 0 : i32
    %c0_i32_0 = arith.constant 0 : i32
    %c0_i32_1 = arith.constant 0 : i32
    return %c0_i32, %c0_i32_0 : i32, i32
  }
  func.func @transform_4(%arg0: i32) -> (i32, i32) {
    %c0_i32 = arith.constant 0 : i32
    %c0_i32_0 = arith.constant 0 : i32
    %c0_i32_1 = arith.constant 0 : i32
    return %c0_i32, %c0_i32_0 : i32, i32
  }
  func.func @transform_5(%arg0: i32) -> (i32, i32) {
    %c0_i32 = arith.constant 0 : i32
    %c0_i32_0 = arith.constant 0 : i32
    %c0_i32_1 = arith.constant 0 : i32
    return %c0_i32, %c0_i32_0 : i32, i32
  }
  func.func @transform_6(%arg0: i32) -> (i32, i32) {
    %c0_i32 = arith.constant 0 : i32
    %c0_i32_0 = arith.constant 0 : i32
    %c0_i32_1 = arith.constant 0 : i32
    return %c0_i32, %c0_i32_0 : i32, i32
  }
  func.func @transform_7(%arg0: i32) -> (i32, i32, i32) {
    %c0_i32 = arith.constant 0 : i32
    %c0_i32_0 = arith.constant 0 : i32
    %c0_i32_1 = arith.constant 0 : i32
    return %arg0, %c0_i32, %c0_i32_0 : i32, i32, i32
  }
}

</mosaic_0001>

<llo_original>
// kernel: tpu_custom_call.1
$region0: #{tpu_custom_call.1}
  #allocation0 [shape = 'u32[]', space=smem, size = 0x4, offset = 0x4, fixed_abs, tag = 'smem constant byte address 0x4 - core index']
  #allocation1 [shape = 'u32[144,128]{1,0:T(1,128)}', space=vmem, size = 0x12000, scoped, tag = 'internal scratch']
  %s0 = inlined_call_operand.vmem [shape: bf16[2,8,32], index: 0, kind: input, shape index: {}]
  %s1 = inlined_call_operand.vmem [shape: bf16[2,128,32], index: 1, kind: input, shape index: {}]
  %s2 = inlined_call_operand.vmem [shape: f32[2,1,128], index: 2, kind: input, shape index: {}]
  %s3 = inlined_call_operand.vmem [shape: bf16[32,32], index: 3, kind: input, shape index: {}]
  %s4 = inlined_call_operand.vmem [shape: f32[1,32], index: 4, kind: input, shape index: {}]
  %s5 = inlined_call_operand.vmem [shape: bf16[32,32], index: 5, kind: input, shape index: {}]
  %s6 = inlined_call_operand.vmem [shape: f32[1,32], index: 6, kind: input, shape index: {}]
  %s7 = inlined_call_operand.hbm [shape: f32[2,8,128], index: 7, kind: output, shape index: {}]
  %s8 = sld [smem:[#allocation0]]
  $region61: #{tpu_custom_call.1} parent=0
    _
  %s10 = ssub.s32 1, %s8
  %s11 = scalar_select 0, %s10, %s8
  $region1: #{tpu_custom_call.1} parent=0
    #allocation2 [shape = 'u8[8192]{0}', space=vmem, size = 0x2000, scoped, tag = 'output window, operand 0']
    #allocation3 [shape = 's32[2]{0}', space=sflag, size = 0x8, scoped, tag = 'scoped memory for tpu_custom_call.1']
    %12 = vsyncpa [#allocation3], 0
    %s13 = scalar_lea.sflag [#allocation3], 1
    %14 = vsyncpa %s13, 0
    loop: start=0, step=1, limit=4
    $region2: #{tpu_custom_call.1} parent=1 // loop_pre_header
      _
    $region3: #{tpu_custom_call.1} parent=1 // loop_header
      %s16 = sphi 0, %s20
      %p17 = scmp.ge.s32.totalorder %s16, 4
      %s26 = sphi 0, %s28
      %s29 = sphi 0, %s26
      %s30 = sphi 0, %s29
      %s46 = sphi 0, %s30
      %s52 = sphi 0, %s54
      %s55 = sphi 0, %s52
      %s56 = sphi 0, %s55
      %s72 = sphi 0, %s56
      %s78 = sphi 0, %s80
      %s81 = sphi 0, %s78
      %s82 = sphi 0, %s81
      %s98 = sphi 0, %s82
      %s102 = sphi 0, %s102
      %s104 = sphi 0, %s102
      %s105 = sphi 0, %s104
      %s119 = sphi 0, %s105
      %s123 = sphi 0, %s123
      %s125 = sphi 0, %s123
      %s126 = sphi 0, %s125
      %s140 = sphi 0, %s126
      %s144 = sphi 0, %s144
      %s146 = sphi 0, %s144
      %s147 = sphi 0, %s146
      %s161 = sphi 0, %s147
      %s165 = sphi 0, %s165
      %s167 = sphi 0, %s165
      %s168 = sphi 0, %s167
      %s182 = sphi 0, %s168
      %s188 = sphi 0, %s190
      %s191 = sphi 0, %s188
      %s192 = sphi 0, %s191
      %s208 = sphi 0, %s192
    $region4: #{tpu_custom_call.1} parent=1 // loop_header_branch
      %19 = sbr.rel (%p17) target = $region8
    $region5: #{tpu_custom_call.1} parent=1 // loop_body
      %s21 = ssub.s32 %s16, 1
      %s22 = ssub.s32 %s16, 2
      %s23 = sadd.s32 %s16, 1
      %s24 = ssub.s32 %s16, %s23
      %p25 = scmp.eq.s32.totalorder %s24, 0
      %s27 = sadd.s32 %s26, 1
      %s28 = scalar_select %p25, %s26, %s27
      %p31 = pneg %p25
      %p32 = scmp.eq.s32.totalorder %s16, 1
      %p33 = por %p31, %p32
      %p34 = scmp.ne.s32.totalorder %s26, %s29
      %p35 = scmp.eq.s32.totalorder %s16, 0
      %p36 = por %p34, %p35
      %p37 = scmp.ne.s32.totalorder %s26, %s29
      %p38 = scmp.eq.s32.totalorder %s21, 1
      %p39 = por %p37, %p38
      %p40 = scmp.ne.s32.totalorder %s29, %s30
      %p41 = scmp.eq.s32.totalorder %s21, 0
      %p42 = por %p40, %p41
      %p43 = scmp.ne.s32.totalorder %s29, %s30
      %p44 = scmp.eq.s32.totalorder %s22, 1
      %p45 = por %p43, %p44
      %p47 = scmp.ne.s32.totalorder %s30, %s46
      %p48 = scmp.eq.s32.totalorder %s22, 0
      %p49 = por %p47, %p48
      %s50 = ssub.s32 %s16, %s23
      %p51 = scmp.eq.s32.totalorder %s50, 0
      %s53 = sadd.s32 %s52, 1
      %s54 = scalar_select %p51, %s52, %s53
      %p57 = pneg %p51
      %p58 = scmp.eq.s32.totalorder %s16, 1
      %p59 = por %p57, %p58
      %p60 = scmp.ne.s32.totalorder %s52, %s55
      %p61 = scmp.eq.s32.totalorder %s16, 0
      %p62 = por %p60, %p61
      %p63 = scmp.ne.s32.totalorder %s52, %s55
      %p64 = scmp.eq.s32.totalorder %s21, 1
      %p65 = por %p63, %p64
      %p66 = scmp.ne.s32.totalorder %s55, %s56
      %p67 = scmp.eq.s32.totalorder %s21, 0
      %p68 = por %p66, %p67
      %p69 = scmp.ne.s32.totalorder %s55, %s56
      %p70 = scmp.eq.s32.totalorder %s22, 1
      %p71 = por %p69, %p70
      %p73 = scmp.ne.s32.totalorder %s56, %s72
      %p74 = scmp.eq.s32.totalorder %s22, 0
      %p75 = por %p73, %p74
      %s76 = ssub.s32 %s16, %s23
      %p77 = scmp.eq.s32.totalorder %s76, 0
      %s79 = sadd.s32 %s78, 1
      %s80 = scalar_select %p77, %s78, %s79
      %p83 = pneg %p77
      %p84 = scmp.eq.s32.totalorder %s16, 1
      %p85 = por %p83, %p84
      %p86 = scmp.ne.s32.totalorder %s78, %s81
      %p87 = scmp.eq.s32.totalorder %s16, 0
      %p88 = por %p86, %p87
      %p89 = scmp.ne.s32.totalorder %s78, %s81
      %p90 = scmp.eq.s32.totalorder %s21, 1
      %p91 = por %p89, %p90
      %p92 = scmp.ne.s32.totalorder %s81, %s82
      %p93 = scmp.eq.s32.totalorder %s21, 0
      %p94 = por %p92, %p93
      %p95 = scmp.ne.s32.totalorder %s81, %s82
      %p96 = scmp.eq.s32.totalorder %s22, 1
      %p97 = por %p95, %p96
      %p99 = scmp.ne.s32.totalorder %s82, %s98
      %p100 = scmp.eq.s32.totalorder %s22, 0
      %p101 = por %p99, %p100
      %s103 = sadd.s32 %s102, 1
      %p106 = scmp.eq.s32.totalorder %s16, 1
      %p107 = scmp.ne.s32.totalorder %s102, %s104
      %p108 = scmp.eq.s32.totalorder %s16, 0
      %p109 = por %p107, %p108
      %p110 = scmp.ne.s32.totalorder %s102, %s104
      %p111 = scmp.eq.s32.totalorder %s21, 1
      %p112 = por %p110, %p111
      %p113 = scmp.ne.s32.totalorder %s104, %s105
      %p114 = scmp.eq.s32.totalorder %s21, 0
      %p115 = por %p113, %p114
      %p116 = scmp.ne.s32.totalorder %s104, %s105
      %p117 = scmp.eq.s32.totalorder %s22, 1
      %p118 = por %p116, %p117
      %p120 = scmp.ne.s32.totalorder %s105, %s119
      %p121 = scmp.eq.s32.totalorder %s22, 0
      %p122 = por %p120, %p121
      %s124 = sadd.s32 %s123, 1
      %p127 = scmp.eq.s32.totalorder %s16, 1
      %p128 = scmp.ne.s32.totalorder %s123, %s125
      %p129 = scmp.eq.s32.totalorder %s16, 0
      %p130 = por %p128, %p129
      %p131 = scmp.ne.s32.totalorder %s123, %s125
      %p132 = scmp.eq.s32.totalorder %s21, 1
      %p133 = por %p131, %p132
      %p134 = scmp.ne.s32.totalorder %s125, %s126
      %p135 = scmp.eq.s32.totalorder %s21, 0
      %p136 = por %p134, %p135
      %p137 = scmp.ne.s32.totalorder %s125, %s126
      %p138 = scmp.eq.s32.totalorder %s22, 1
      %p139 = por %p137, %p138
      %p141 = scmp.ne.s32.totalorder %s126, %s140
      %p142 = scmp.eq.s32.totalorder %s22, 0
      %p143 = por %p141, %p142
      %s145 = sadd.s32 %s144, 1
      %p148 = scmp.eq.s32.totalorder %s16, 1
      %p149 = scmp.ne.s32.totalorder %s144, %s146
      %p150 = scmp.eq.s32.totalorder %s16, 0
      %p151 = por %p149, %p150
      %p152 = scmp.ne.s32.totalorder %s144, %s146
      %p153 = scmp.eq.s32.totalorder %s21, 1
      %p154 = por %p152, %p153
      %p155 = scmp.ne.s32.totalorder %s146, %s147
      %p156 = scmp.eq.s32.totalorder %s21, 0
      %p157 = por %p155, %p156
      %p158 = scmp.ne.s32.totalorder %s146, %s147
      %p159 = scmp.eq.s32.totalorder %s22, 1
      %p160 = por %p158, %p159
      %p162 = scmp.ne.s32.totalorder %s147, %s161
      %p163 = scmp.eq.s32.totalorder %s22, 0
      %p164 = por %p162, %p163
      %s166 = sadd.s32 %s165, 1
      %p169 = scmp.eq.s32.totalorder %s16, 1
      %p170 = scmp.ne.s32.totalorder %s165, %s167
      %p171 = scmp.eq.s32.totalorder %s16, 0
      %p172 = por %p170, %p171
      %p173 = scmp.ne.s32.totalorder %s165, %s167
      %p174 = scmp.eq.s32.totalorder %s21, 1
      %p175 = por %p173, %p174
      %p176 = scmp.ne.s32.totalorder %s167, %s168
      %p177 = scmp.eq.s32.totalorder %s21, 0
      %p178 = por %p176, %p177
      %p179 = scmp.ne.s32.totalorder %s167, %s168
      %p180 = scmp.eq.s32.totalorder %s22, 1
      %p181 = por %p179, %p180
      %p183 = scmp.ne.s32.totalorder %s168, %s182
      %p184 = scmp.eq.s32.totalorder %s22, 0
      %p185 = por %p183, %p184
      %s186 = ssub.s32 %s16, %s23
      %p187 = scmp.eq.s32.totalorder %s186, 0
      %s189 = sadd.s32 %s188, 1
      %s190 = scalar_select %p187, %s188, %s189
      %p193 = pneg %p187
      %p194 = scmp.eq.s32.totalorder %s16, 1
      %p195 = por %p193, %p194
      %p196 = scmp.ne.s32.totalorder %s188, %s191
      %p197 = scmp.eq.s32.totalorder %s16, 0
      %p198 = por %p196, %p197
      %p199 = scmp.ne.s32.totalorder %s188, %s191
      %p200 = scmp.eq.s32.totalorder %s21, 1
      %p201 = por %p199, %p200
      %p202 = scmp.ne.s32.totalorder %s191, %s192
      %p203 = scmp.eq.s32.totalorder %s21, 0
      %p204 = por %p202, %p203
      %p205 = scmp.ne.s32.totalorder %s191, %s192
      %p206 = scmp.eq.s32.totalorder %s22, 1
      %p207 = por %p205, %p206
      %p209 = scmp.ne.s32.totalorder %s192, %s208
      %p210 = scmp.eq.s32.totalorder %s22, 0
      %p211 = por %p209, %p210
      %p212 = scmp.le.s32.totalorder 1, %s16
      %p213 = scmp.lt.s32.totalorder %s16, 3
      %p214 = pnand %p212, %p213
      %p215 = pneg %p214
      // Predicated region
      $region9: #{tpu_custom_call.1} parent=5 // pred_check
        _
      $region10: #{tpu_custom_call.1} parent=5 // pred_check_branch
        %217 = sbr.rel (%p214) target = $region12
      $region11: #{tpu_custom_call.1} parent=5 // pred_region
        %s218 = ssub.s32 %s16, 1
        // Predicated region
        $region13: #{tpu_custom_call.1} parent=11 // pred_check
          %p219 = pneg %p115
        $region14: #{tpu_custom_call.1} parent=11 // pred_check_branch
          %221 = sbr.rel (%p219) target = $region16
        $region15: #{tpu_custom_call.1} parent=11 // pred_region
          _
        $region16: #{tpu_custom_call.1} parent=11 // pred_fallthru
          _
        // Predicated region
        $region17: #{tpu_custom_call.1} parent=11 // pred_check
          %p222 = pneg %p136
        $region18: #{tpu_custom_call.1} parent=11 // pred_check_branch
          %224 = sbr.rel (%p222) target = $region20
        $region19: #{tpu_custom_call.1} parent=11 // pred_region
          _
        $region20: #{tpu_custom_call.1} parent=11 // pred_fallthru
          _
        // Predicated region
        $region21: #{tpu_custom_call.1} parent=11 // pred_check
          %p225 = pneg %p157
        $region22: #{tpu_custom_call.1} parent=11 // pred_check_branch
          %227 = sbr.rel (%p225) target = $region24
        $region23: #{tpu_custom_call.1} parent=11 // pred_region
          _
        $region24: #{tpu_custom_call.1} parent=11 // pred_fallthru
          _
        // Predicated region
        $region25: #{tpu_custom_call.1} parent=11 // pred_check
          %p228 = pneg %p178
        $region26: #{tpu_custom_call.1} parent=11 // pred_check_branch
          %230 = sbr.rel (%p228) target = $region28
        $region27: #{tpu_custom_call.1} parent=11 // pred_region
          _
        $region28: #{tpu_custom_call.1} parent=11 // pred_fallthru
          _
      $region12: #{tpu_custom_call.1} parent=5 // pred_fallthru
        _
      %p231 = scmp.lt.s32.totalorder %s16, 2
      // Predicated region
      $region29: #{tpu_custom_call.1} parent=5 // pred_check
        %p232 = pneg %p231
      $region30: #{tpu_custom_call.1} parent=5 // pred_check_branch
        %234 = sbr.rel (%p232) target = $region32
      $region31: #{tpu_custom_call.1} parent=5 // pred_region
        // Predicated region
        $region33: #{tpu_custom_call.1} parent=31 // pred_check
          %p235 = pneg %p36
        $region34: #{tpu_custom_call.1} parent=31 // pred_check_branch
          %237 = sbr.rel (%p235) target = $region36
        $region35: #{tpu_custom_call.1} parent=31 // pred_region
          %p238 = scmp.lt.s32.totalorder %s16, 1
          %s239 = scalar_select %p238, %s16, 1
          %s240 = smul.addr %s239, 4
          %s241 = scalar_lea.vmem %s0, %s240
        $region36: #{tpu_custom_call.1} parent=31 // pred_fallthru
          _
        // Predicated region
        $region37: #{tpu_custom_call.1} parent=31 // pred_check
          %p242 = pneg %p62
        $region38: #{tpu_custom_call.1} parent=31 // pred_check_branch
          %244 = sbr.rel (%p242) target = $region40
        $region39: #{tpu_custom_call.1} parent=31 // pred_region
          %p245 = scmp.lt.s32.totalorder %s16, 1
          %s246 = scalar_select %p245, %s16, 1
          %s247 = smul.addr %s246, 16
          %s248 = smul.addr %s247, 4
          %s249 = scalar_lea.vmem %s1, %s248
        $region40: #{tpu_custom_call.1} parent=31 // pred_fallthru
          _
        // Predicated region
        $region41: #{tpu_custom_call.1} parent=31 // pred_check
          %p250 = pneg %p88
        $region42: #{tpu_custom_call.1} parent=31 // pred_check_branch
          %252 = sbr.rel (%p250) target = $region44
        $region43: #{tpu_custom_call.1} parent=31 // pred_region
          %p253 = scmp.lt.s32.totalorder %s16, 1
          %s254 = scalar_select %p253, %s16, 1
          %s255 = scalar_lea.vmem %s2, %s254
        $region44: #{tpu_custom_call.1} parent=31 // pred_fallthru
          _
      $region32: #{tpu_custom_call.1} parent=5 // pred_fallthru
        _
      %p256 = scmp.le.s32.totalorder 1, %s16
      %p257 = scmp.lt.s32.totalorder %s16, 3
      %p258 = pnand %p256, %p257
      %p259 = pneg %p258
      // Predicated region
      $region45: #{tpu_custom_call.1} parent=5 // pred_check
        _
      $region46: #{tpu_custom_call.1} parent=5 // pred_check_branch
        %261 = sbr.rel (%p258) target = $region48
      $region47: #{tpu_custom_call.1} parent=5 // pred_region
        %s262 = ssub.s32 %s16, 1
        %p263 = scmp.lt.s32.totalorder %s21, 1
        %s264 = scalar_select %p263, %s21, 1
        %s265 = smul.addr %s264, 4
        %s266 = scalar_lea.vmem %s0, %s265
        %p267 = pneg %p42
        %p268 = pneg %p39
        %p269 = scmp.lt.s32.totalorder %s21, 1
        %s270 = scalar_select %p269, %s21, 1
        %s271 = smul.addr %s270, 16
        %s272 = smul.addr %s271, 4
        %s273 = scalar_lea.vmem %s1, %s272
        %p274 = pneg %p68
        %p275 = pneg %p65
        %p276 = scmp.lt.s32.totalorder %s21, 1
        %s277 = scalar_select %p276, %s21, 1
        %s278 = scalar_lea.vmem %s2, %s277
        %p279 = pneg %p94
        %p280 = pneg %p91
        %p281 = pneg %p115
        %p282 = pneg %p112
        %p283 = pneg %p136
        %p284 = pneg %p133
        %p285 = pneg %p157
        %p286 = pneg %p154
        %p287 = pneg %p178
        %p288 = pneg %p175
        %p289 = pneg %p204
        %p290 = pneg %p201
        %s291 = sand.u32 %s191, 1
        %s292 = scalar_lea.sflag [#allocation3], %s291
        %s293 = sand.u32 %s191, 1
        %s294 = smul.addr %s293, 8
        %s295 = scalar_lea.vmem [#allocation2], %s294
        %p296 = scmp.lt.s32.totalorder %s21, 1
        %s297 = scalar_select %p296, %s21, 1
        %s298 = smul.addr %s297, 4
        %s299 = scalar_lea.vmem %s0, %s298
        %p300 = scmp.lt.s32.totalorder %s21, 1
        %s301 = scalar_select %p300, %s21, 1
        %s302 = smul.addr %s301, 16
        %s303 = smul.addr %s302, 4
        %s304 = scalar_lea.vmem %s1, %s303
        %p305 = scmp.lt.s32.totalorder %s21, 1
        %s306 = scalar_select %p305, %s21, 1
        %s307 = scalar_lea.vmem %s2, %s306
        %v309 = vld [vmem:[%s299] sm:$0xf]
        %v310 = vld [vmem:[%s304] sm:$0xf]
        %v311 = vld [vmem:[%s304 + $0x4] sm:$0xf]
        %v312 = vld [vmem:[%s304 + $0x8] sm:$0xf]
        %v313 = vld [vmem:[%s304 + $0xc] sm:$0xf]
        %v314 = vld [vmem:[%s304 + $0x10] sm:$0xf]
        %v315 = vld [vmem:[%s304 + $0x14] sm:$0xf]
        %v316 = vld [vmem:[%s304 + $0x18] sm:$0xf]
        %v317 = vld [vmem:[%s304 + $0x1c] sm:$0xf]
        %v318 = vld [vmem:[%s304 + $0x20] sm:$0xf]
        %v319 = vld [vmem:[%s304 + $0x24] sm:$0xf]
        %v320 = vld [vmem:[%s304 + $0x28] sm:$0xf]
        %v321 = vld [vmem:[%s304 + $0x2c] sm:$0xf]
        %v322 = vld [vmem:[%s304 + $0x30] sm:$0xf]
        %v323 = vld [vmem:[%s304 + $0x34] sm:$0xf]
        %v324 = vld [vmem:[%s304 + $0x38] sm:$0xf]
        %v325 = vld [vmem:[%s304 + $0x3c] sm:$0xf]
        %v326 = vld [vmem:[%s3] sm:$0xf]
        %v327 = vld [vmem:[%s3 + $0x4] sm:$0xf]
        %v328 = vld [vmem:[%s3 + $0x8] sm:$0xf]
        %v329 = vld [vmem:[%s3 + $0xc] sm:$0xf]
        %v330 = vld [vmem:[%s4] sm:$0x1]
        %v332 = vlaneseq
        %v333 = vshrl.u32 %v332, 7
        %v334 = vsub.s32 0, %v333
        %v335 = vrot.slane %v330, %v334
        %v341 = vunpack.c.l.b16 %v326
        %v342 = vunpack.c.l.b16 %v327
        %v343 = vunpack.c.l.b16 %v328
        %v344 = vunpack.c.l.b16 %v329
        %v345 = vpack.c.b16 %v342, %v341
        %v346 = vpack.c.b16 %v344, %v343
        %vm349 = vcmask 261120
        %v351 = vsel %vm349, %v309, 0
        %353 = vmatprep.subr.bf16.mxu0 0
        %354 = vmatpush1.bf16.msra.mxu0 0
        %355 = vmatprep.subr.bf16.mxu0 0
        %356 = vmatpush1.bf16.msra.mxu0 0
        %357 = vmatprep.subr.bf16.mxu0 0
        %358 = vmatpush1.bf16.msra.mxu0 0
        %359 = vmatprep.subr.bf16.mxu0 0
        %360 = vmatpush1.bf16.msra.mxu0 0
        %361 = vmatprep.subr.bf16.mxu0 0
        %362 = vmatpush1.bf16.msra.mxu0 0
        %363 = vmatprep.subr.bf16.mxu0 0
        %364 = vmatpush1.bf16.msra.mxu0 0
        %365 = vmatprep.subr.bf16.mxu0 0
        %366 = vmatpush1.bf16.msra.mxu0 %v346
        %367 = vmatprep.subr.bf16.mxu0 0
        %368 = vmatpush1.bf16.msra.mxu0 %v345
        %369 = vmatprep.subr.bf16.mxu0 0
        %370 = vmatpush2.bf16.msra.mxu0 0
        %371 = vmatprep.subr.bf16.mxu0 0
        %372 = vmatpush2.bf16.msra.mxu0 0
        %373 = vmatprep.subr.bf16.mxu0 0
        %374 = vmatpush2.bf16.msra.mxu0 0
        %375 = vmatprep.subr.bf16.mxu0 0
        %376 = vmatpush2.bf16.msra.mxu0 0
        %377 = vmatprep.subr.bf16.mxu0 0
        %378 = vmatpush2.bf16.msra.mxu0 0
        %379 = vmatprep.subr.bf16.mxu0 0
        %380 = vmatpush2.bf16.msra.mxu0 0
        %381 = vmatprep.subr.bf16.mxu0 0
        %382 = vmatpush2.bf16.msra.mxu0 0
        %383 = vmatprep.subr.bf16.mxu0 0
        %384 = vmatpush2.bf16.msra.mxu0 0
        %385 = vmatprep.mubr.bf16.mxu0 0
        %386 = vmatmul.mubr.bf16.gmra.mxu0 %v351
        %v387 = vpop.f32.mrf.mxu0
        %v388 = vadd.f32 %v335, %v387
        %v389 = vpop.f32.mrf.mxu0
        %v390 = vpop.f32.mrf.mxu0
        %v391 = vpop.f32.mrf.mxu0
        %392 = vdwg.mxu0
        %v393 = vld [vmem:[%s5] sm:$0xf]
        %v394 = vld [vmem:[%s5 + $0x4] sm:$0xf]
        %v395 = vld [vmem:[%s5 + $0x8] sm:$0xf]
        %v396 = vld [vmem:[%s5 + $0xc] sm:$0xf]
        %v397 = vld [vmem:[%s6] sm:$0x1]
        %v399 = vlaneseq
        %v400 = vshrl.u32 %v399, 7
        %v401 = vsub.s32 0, %v400
        %v402 = vrot.slane %v397, %v401
        %v420 = vunpack.c.l.b16 %v310
        %v421 = vunpack.c.l.b16 %v311
        %v422 = vunpack.c.l.b16 %v312
        %v423 = vunpack.c.l.b16 %v313
        %v424 = vunpack.c.l.b16 %v314
        %v425 = vunpack.c.l.b16 %v315
        %v426 = vunpack.c.l.b16 %v316
        %v427 = vunpack.c.l.b16 %v317
        %v428 = vunpack.c.l.b16 %v318
        %v429 = vunpack.c.l.b16 %v319
        %v430 = vunpack.c.l.b16 %v320
        %v431 = vunpack.c.l.b16 %v321
        %v432 = vunpack.c.l.b16 %v322
        %v433 = vunpack.c.l.b16 %v323
        %v434 = vunpack.c.l.b16 %v324
        %v435 = vunpack.c.l.b16 %v325
        %v436 = vpack.c.b16 %v421, %v420
        %v437 = vpack.c.b16 %v423, %v422
        %v438 = vpack.c.b16 %v425, %v424
        %v439 = vpack.c.b16 %v427, %v426
        %v440 = vpack.c.b16 %v429, %v428
        %v441 = vpack.c.b16 %v431, %v430
        %v442 = vpack.c.b16 %v433, %v432
        %v443 = vpack.c.b16 %v435, %v434
        %v448 = vunpack.c.l.b16 %v393
        %v449 = vunpack.c.l.b16 %v394
        %v450 = vunpack.c.l.b16 %v395
        %v451 = vunpack.c.l.b16 %v396
        %v452 = vpack.c.b16 %v449, %v448
        %v453 = vpack.c.b16 %v451, %v450
        %v457 = vsel %vm349, %v436, 0
        %v460 = vsel %vm349, %v437, 0
        %v463 = vsel %vm349, %v438, 0
        %v466 = vsel %vm349, %v439, 0
        %v469 = vsel %vm349, %v440, 0
        %v472 = vsel %vm349, %v441, 0
        %v475 = vsel %vm349, %v442, 0
        %v478 = vsel %vm349, %v443, 0
        %480 = vmatprep.subr.bf16.mxu0 0
        %481 = vmatpush1.bf16.msra.mxu0 0
        %482 = vmatprep.subr.bf16.mxu0 0
        %483 = vmatpush1.bf16.msra.mxu0 0
        %484 = vmatprep.subr.bf16.mxu0 0
        %485 = vmatpush1.bf16.msra.mxu0 0
        %486 = vmatprep.subr.bf16.mxu0 0
        %487 = vmatpush1.bf16.msra.mxu0 0
        %488 = vmatprep.subr.bf16.mxu0 0
        %489 = vmatpush1.bf16.msra.mxu0 0
        %490 = vmatprep.subr.bf16.mxu0 0
        %491 = vmatpush1.bf16.msra.mxu0 0
        %492 = vmatprep.subr.bf16.mxu0 0
        %493 = vmatpush1.bf16.msra.mxu0 %v453
        %494 = vmatprep.subr.bf16.mxu0 0
        %495 = vmatpush1.bf16.msra.mxu0 %v452
        %496 = vmatprep.subr.bf16.mxu0 0
        %497 = vmatpush2.bf16.msra.mxu0 0
        %498 = vmatprep.subr.bf16.mxu0 0
        %499 = vmatpush2.bf16.msra.mxu0 0
        %500 = vmatprep.subr.bf16.mxu0 0
        %501 = vmatpush2.bf16.msra.mxu0 0
        %502 = vmatprep.subr.bf16.mxu0 0
        %503 = vmatpush2.bf16.msra.mxu0 0
        %504 = vmatprep.subr.bf16.mxu0 0
        %505 = vmatpush2.bf16.msra.mxu0 0
        %506 = vmatprep.subr.bf16.mxu0 0
        %507 = vmatpush2.bf16.msra.mxu0 0
        %508 = vmatprep.subr.bf16.mxu0 0
        %509 = vmatpush2.bf16.msra.mxu0 0
        %510 = vmatprep.subr.bf16.mxu0 0
        %511 = vmatpush2.bf16.msra.mxu0 0
        %512 = vmatprep.mubr.bf16.mxu0 0
        %513 = vmatmul.mubr.bf16.gmra.mxu0 %v457
        %v514 = vpop.f32.mrf.mxu0
        %v515 = vadd.f32 %v402, %v514
        %v516 = vpop.f32.mrf.mxu0
        %v517 = vpop.f32.mrf.mxu0
        %v518 = vadd.f32 %v402, %v517
        %v519 = vpop.f32.mrf.mxu0
        %520 = vmatprep.mubr.bf16.mxu0 0
        %521 = vmatmul.mubr.bf16.gmra.mxu0 %v460
        %v522 = vpop.f32.mrf.mxu0
        %v523 = vadd.f32 %v402, %v522
        %v524 = vpop.f32.mrf.mxu0
        %v525 = vpop.f32.mrf.mxu0
        %v526 = vadd.f32 %v402, %v525
        %v527 = vpop.f32.mrf.mxu0
        %528 = vmatprep.mubr.bf16.mxu0 0
        %529 = vmatmul.mubr.bf16.gmra.mxu0 %v463
        %v530 = vpop.f32.mrf.mxu0
        %v531 = vadd.f32 %v402, %v530
        %v532 = vpop.f32.mrf.mxu0
        %v533 = vpop.f32.mrf.mxu0
        %v534 = vadd.f32 %v402, %v533
        %v535 = vpop.f32.mrf.mxu0
        %536 = vmatprep.mubr.bf16.mxu0 0
        %537 = vmatmul.mubr.bf16.gmra.mxu0 %v466
        %v538 = vpop.f32.mrf.mxu0
        %v539 = vadd.f32 %v402, %v538
        %v540 = vpop.f32.mrf.mxu0
        %v541 = vpop.f32.mrf.mxu0
        %v542 = vadd.f32 %v402, %v541
        %v543 = vpop.f32.mrf.mxu0
        %544 = vmatprep.mubr.bf16.mxu0 0
        %545 = vmatmul.mubr.bf16.gmra.mxu0 %v469
        %v546 = vpop.f32.mrf.mxu0
        %v547 = vadd.f32 %v402, %v546
        %v548 = vpop.f32.mrf.mxu0
        %v549 = vpop.f32.mrf.mxu0
        %v550 = vadd.f32 %v402, %v549
        %v551 = vpop.f32.mrf.mxu0
        %552 = vmatprep.mubr.bf16.mxu0 0
        %553 = vmatmul.mubr.bf16.gmra.mxu0 %v472
        %v554 = vpop.f32.mrf.mxu0
        %v555 = vadd.f32 %v402, %v554
        %v556 = vpop.f32.mrf.mxu0
        %v557 = vpop.f32.mrf.mxu0
        %v558 = vadd.f32 %v402, %v557
        %v559 = vpop.f32.mrf.mxu0
        %560 = vmatprep.mubr.bf16.mxu0 0
        %561 = vmatmul.mubr.bf16.gmra.mxu0 %v475
        %v562 = vpop.f32.mrf.mxu0
        %v563 = vadd.f32 %v402, %v562
        %v564 = vpop.f32.mrf.mxu0
        %v565 = vpop.f32.mrf.mxu0
        %v566 = vadd.f32 %v402, %v565
        %v567 = vpop.f32.mrf.mxu0
        %568 = vmatprep.mubr.bf16.mxu0 0
        %569 = vmatmul.mubr.bf16.gmra.mxu0 %v478
        %v570 = vpop.f32.mrf.mxu0
        %v571 = vadd.f32 %v402, %v570
        %v572 = vpop.f32.mrf.mxu0
        %v573 = vpop.f32.mrf.mxu0
        %v574 = vadd.f32 %v402, %v573
        %v575 = vpop.f32.mrf.mxu0
        %576 = vdwg.mxu0
        %v577 = vpack.c.bf16 %v388, %v388
        %v578 = vpack.c.bf16 %v518, %v515
        %v579 = vpack.c.bf16 %v526, %v523
        %v580 = vpack.c.bf16 %v534, %v531
        %v581 = vpack.c.bf16 %v542, %v539
        %v582 = vpack.c.bf16 %v550, %v547
        %v583 = vpack.c.bf16 %v558, %v555
        %v584 = vpack.c.bf16 %v566, %v563
        %v585 = vpack.c.bf16 %v574, %v571
        %v586 = vld [vmem:[%s307] sm:$0x1]
        %v587 = vsub.f32 1.0, %v586
        %v588 = vmul.f32 %v587, -10000.0
        %v590 = vlaneseq
        %v591 = vshrl.u32 %v590, 7
        %v592 = vsub.s32 0, %v591
        %v593 = vrot.slane %v588, %v592
        %v596 = vsel %vm349, %v577, 0
        %v599 = vsel %vm349, %v578, 0
        %v602 = vsel %vm349, %v579, 0
        %v605 = vsel %vm349, %v580, 0
        %v608 = vsel %vm349, %v581, 0
        %v611 = vsel %vm349, %v582, 0
        %v614 = vsel %vm349, %v583, 0
        %v617 = vsel %vm349, %v584, 0
        %v620 = vsel %vm349, %v585, 0
        %622 = vmatprep.subr.bf16.mxu0 0
        %623 = vmatpush1.bf16.xpose.msra.mxu0 %v620
        %624 = vmatprep.subr.bf16.mxu0 0
        %625 = vmatpush1.bf16.xpose.msra.mxu0 %v617
        %626 = vmatprep.subr.bf16.mxu0 0
        %627 = vmatpush1.bf16.xpose.msra.mxu0 %v614
        %628 = vmatprep.subr.bf16.mxu0 0
        %629 = vmatpush1.bf16.xpose.msra.mxu0 %v611
        %630 = vmatprep.subr.bf16.mxu0 0
        %631 = vmatpush1.bf16.xpose.msra.mxu0 %v608
        %632 = vmatprep.subr.bf16.mxu0 0
        %633 = vmatpush1.bf16.xpose.msra.mxu0 %v605
        %634 = vmatprep.subr.bf16.mxu0 0
        %635 = vmatpush1.bf16.xpose.msra.mxu0 %v602
        %636 = vmatprep.subr.bf16.mxu0 0
        %637 = vmatpush1.bf16.xpose.msra.mxu0 %v599
        %638 = vmatprep.subr.bf16.mxu0 0
        %639 = vmatpush2.bf16.xpose.msra.mxu0 0
        %640 = vmatprep.subr.bf16.mxu0 0
        %641 = vmatpush2.bf16.xpose.msra.mxu0 0
        %642 = vmatprep.subr.bf16.mxu0 0
        %643 = vmatpush2.bf16.xpose.msra.mxu0 0
        %644 = vmatprep.subr.bf16.mxu0 0
        %645 = vmatpush2.bf16.xpose.msra.mxu0 0
        %646 = vmatprep.subr.bf16.mxu0 0
        %647 = vmatpush2.bf16.xpose.msra.mxu0 0
        %648 = vmatprep.subr.bf16.mxu0 0
        %649 = vmatpush2.bf16.xpose.msra.mxu0 0
        %650 = vmatprep.subr.bf16.mxu0 0
        %651 = vmatpush2.bf16.xpose.msra.mxu0 0
        %652 = vmatprep.subr.bf16.mxu0 0
        %653 = vmatpush2.bf16.xpose.msra.mxu0 0
        %654 = vmatprep.mubr.bf16.mxu0 0
        %655 = vmatmul.mubr.bf16.gmra.mxu0 %v596
        %v656 = vpop.f32.mrf.mxu0
        %v657 = vadd.f32 %v593, %v656
        %v658 = vpop.f32.mrf.mxu0
        %v659 = vpop.f32.mrf.mxu0
        %v660 = vpop.f32.mrf.mxu0
        %661 = vdwg.mxu0
        %662 = vst [vmem:[%s295] sm:$0xff] %v657
        %s663 = sand.u32 %s191, 1
        %s664 = scalar_lea.sflag [#allocation3], %s663
        %s665 = sand.u32 %s191, 1
        %s666 = smul.addr %s665, 8
        %s667 = scalar_lea.vmem [#allocation2], %s666
        // Predicated region
        $region49: #{tpu_custom_call.1} parent=47 // pred_check
          %p668 = pneg %p201
        $region50: #{tpu_custom_call.1} parent=47 // pred_check_branch
          %670 = sbr.rel (%p668) target = $region52
        $region51: #{tpu_custom_call.1} parent=47 // pred_region
          %s672 = ssub.s32 128, 128
          %673 = vsyncadd %s664, %s672
          %s674 = smul.addr %s21, 128
          %s675 = scalar_lea.hbm %s7, %s674
          %s677 = sshll.u32 %s667, 4
          %s678 = int_to_ptr.vmem [resolvable:$true] %s677
          %680 = dma.vmem_to_hbm [thread:$0]  %s678, 128, %s675, %s664
        $region52: #{tpu_custom_call.1} parent=47 // pred_fallthru
          _
      $region48: #{tpu_custom_call.1} parent=5 // pred_fallthru
        _
      %p681 = scmp.le.s32.totalorder 2, %s16
      // Predicated region
      $region53: #{tpu_custom_call.1} parent=5 // pred_check
        %p682 = pneg %p681
      $region54: #{tpu_custom_call.1} parent=5 // pred_check_branch
        %684 = sbr.rel (%p682) target = $region56
      $region55: #{tpu_custom_call.1} parent=5 // pred_region
        %s685 = ssub.s32 %s16, 2
        // Predicated region
        $region57: #{tpu_custom_call.1} parent=55 // pred_check
          %p686 = pneg %p207
        $region58: #{tpu_custom_call.1} parent=55 // pred_check_branch
          %688 = sbr.rel (%p686) target = $region60
        $region59: #{tpu_custom_call.1} parent=55 // pred_region
          %s689 = sand.u32 %s192, 1
          %s690 = scalar_lea.sflag [#allocation3], %s689
          %s691 = sand.u32 %s192, 1
          %s692 = smul.addr %s691, 8
          %s693 = scalar_lea.vmem [#allocation2], %s692
          %694 = dma.done %s690, 128
        $region60: #{tpu_custom_call.1} parent=55 // pred_fallthru
          _
      $region56: #{tpu_custom_call.1} parent=5 // pred_fallthru
        _
    $region6: #{tpu_custom_call.1} parent=1 // loop_footer
      %s20 = sadd.s32 1, %s16
    $region7: #{tpu_custom_call.1} parent=1 // loop_footer_branch
      %15 = sbr.rel target = $region3
    $region8: #{tpu_custom_call.1} parent=1 // loop_exit
      _
    %695 = vsyncpa [#allocation3], 1
    %s696 = scalar_lea.sflag [#allocation3], 1
    %697 = vsyncpa %s696, 1

</llo_original>
